<compile_context>
chip_gen: v6e
topology: v6e:2x2x1
jax: 0.10.0
libtpu: 0.0.40
codegen_flags: <defaults>
</compile_context>

<pallas_src>
import jax
import jax.numpy as jnp
from jax.experimental import pallas as pl
from jax.experimental.pallas import tpu as pltpu


def _round_up(x, m):
    return (x + m - 1) // m * m


def nmf_kernel(ug_ref, ig_ref, um_ref, im_ref,
               w1t_ref, w1b_ref, b1_ref,
               wpg_ref, wph_ref, bp_ref,
               out_ref):
    f32 = jnp.float32

    # GMF branch: elementwise product (VPU), always in f32.
    gmf = ug_ref[...].astype(f32) * ig_ref[...].astype(f32)          # (TB, L)

    # MLP branch without concat:  [um | im] @ [W1t ; W1b] = um@W1t + im@W1b
    h = (jnp.dot(um_ref[...], w1t_ref[...], preferred_element_type=f32)
         + jnp.dot(im_ref[...], w1b_ref[...], preferred_element_type=f32))
    h = jnp.maximum(h + b1_ref[...], 0.0)                            # (TB, L)

    # Prediction head without concat / N=1 matmul:
    #   y = sum_l gmf*wp_g + h*wp_h  (broadcast-mul on VPU + lane reduce on XLU)
    y = jnp.sum(gmf * wpg_ref[...] + h * wph_ref[...],
                axis=-1, keepdims=True)                              # (TB, 1)
    out_ref[...] = (y + bp_ref[...]).astype(out_ref.dtype)


def nmf_forward(params, user_indices, item_indices, *,
                block_b=1024, compute_dtype=jnp.float32):
    """NMF forward pass.  Returns shape (B,) float32."""
    B = user_indices.shape[0]
    L = params["gmf_user_emb"].shape[1]

    # Batch tiling: TB multiple of 8 (sublane), pad B up to a multiple of TB.
    TB = min(block_b, _round_up(B, 8))
    B_pad = _round_up(B, TB)
    if B_pad != B:
        pad = B_pad - B
        user_indices = jnp.pad(user_indices, (0, pad))
        item_indices = jnp.pad(item_indices, (0, pad))

    cd = compute_dtype
    # --- glue: embedding gathers stay in JAX (data-dependent lookups) ---
    ug = params["gmf_user_emb"][user_indices].astype(cd)   # (B_pad, L)
    ig = params["gmf_item_emb"][item_indices].astype(cd)
    um = params["mlp_user_emb"][user_indices].astype(cd)
    im = params["mlp_item_emb"][item_indices].astype(cd)

    # Split weights in the wrapper so the kernel never concatenates.
    w1 = params["fc1_w"].astype(cd)                        # (2L, L)
    w1_top, w1_bot = w1[:L], w1[L:]                        # (L, L) each
    b1 = params["fc1_b"].reshape(1, L).astype(jnp.float32)
    wp = params["pred_w"].astype(jnp.float32)              # (2L, 1)
    wp_g = wp[:L].reshape(1, L)                            # (1, L) rows for
    wp_h = wp[L:].reshape(1, L)                            # VPU broadcast
    bp = params["pred_b"].reshape(1, 1).astype(jnp.float32)

    emb_spec = pl.BlockSpec((TB, L), lambda i: (i, 0))     # streamed per tile
    res = lambda shape: pl.BlockSpec(shape, lambda i: (0, 0))  # resident

    out = pl.pallas_call(
        nmf_kernel,
        out_shape=jax.ShapeDtypeStruct((B_pad, 1), jnp.float32),
        grid=(B_pad // TB,),
        in_specs=[
            emb_spec, emb_spec, emb_spec, emb_spec,        # ug, ig, um, im
            res((L, L)), res((L, L)), res((1, L)),         # w1_top, w1_bot, b1
            res((1, L)), res((1, L)), res((1, 1)),         # wp_g, wp_h, bp
        ],
        out_specs=pl.BlockSpec((TB, 1), lambda i: (i, 0)),
        compiler_params=pltpu.CompilerParams(
            dimension_semantics=("parallel",)),
    )(ug, ig, um, im, w1_top, w1_bot, b1, wp_g, wp_h, bp)

    return out[:B, 0]                                      # (B,)


def init_params(key, num_users, num_items, latent_dim):
    ks = jax.random.split(key, 8)
    L = latent_dim
    return {
        "gmf_user_emb": jax.random.normal(ks[0], (num_users, L), jnp.float32) * 0.1,
        "gmf_item_emb": jax.random.normal(ks[1], (num_items, L), jnp.float32) * 0.1,
        "mlp_user_emb": jax.random.normal(ks[2], (num_users, L), jnp.float32) * 0.1,
        "mlp_item_emb": jax.random.normal(ks[3], (num_items, L), jnp.float32) * 0.1,
        # Linear(2L -> L): stored (in, out) so forward is x @ W + b.
        "fc1_w": jax.random.normal(ks[4], (2 * L, L), jnp.float32) * 0.1,
        "fc1_b": jax.random.normal(ks[5], (L,), jnp.float32) * 0.1,
        # Linear(2L -> 1)
        "pred_w": jax.random.normal(ks[6], (2 * L, 1), jnp.float32) * 0.1,
        "pred_b": jax.random.normal(ks[7], (1,), jnp.float32) * 0.1,
    }


def nmf_reference(params, user_indices, item_indices):
    """Pure-JAX reference (mirrors the PyTorch module)."""
    ug = params["gmf_user_emb"][user_indices]
    ig = params["gmf_item_emb"][item_indices]
    um = params["mlp_user_emb"][user_indices]
    im = params["mlp_item_emb"][item_indices]
    gmf = ug * ig
    h = jnp.maximum(jnp.concatenate([um, im], -1) @ params["fc1_w"]
                    + params["fc1_b"], 0.0)
    c = jnp.concatenate([gmf, h], axis=1)
    return (c @ params["pred_w"] + params["pred_b"]).squeeze(-1)


if __name__ == "__main__":
    num_users, num_items, latent_dim = 100, 200, 32

    key = jax.random.PRNGKey(0)
    kp, ku, ki = jax.random.split(key, 3)
    params = init_params(kp, num_users, num_items, latent_dim)

    # --- small batch, single tile ---
    batch = 8
    user_idx = jax.random.randint(ku, (batch,), 0, num_users, dtype=jnp.int32)
    item_idx = jax.random.randint(ki, (batch,), 0, num_items, dtype=jnp.int32)
    out = nmf_forward(params, user_idx, item_idx)
    jax.block_until_ready(out)
    ref = nmf_reference(params, user_idx, item_idx)
    assert out.shape == (batch,)
    assert jnp.allclose(out, ref, atol=1e-5, rtol=1e-5), (out, ref)

    # --- multi-tile grid with ragged batch (B not a multiple of the tile) ---
    batch2 = 1000
    ku2, ki2 = jax.random.split(jax.random.PRNGKey(1), 2)
    uidx2 = jax.random.randint(ku2, (batch2,), 0, num_users, dtype=jnp.int32)
    iidx2 = jax.random.randint(ki2, (batch2,), 0, num_items, dtype=jnp.int32)
    out2 = nmf_forward(params, uidx2, iidx2, block_b=256)
    jax.block_until_ready(out2)
    ref2 = nmf_reference(params, uidx2, iidx2)
    assert out2.shape == (batch2,)
    assert jnp.allclose(out2, ref2, atol=1e-5, rtol=1e-5)

    # --- bf16 streaming path (halves HBM bytes; f32 accumulation inside) ---
    out3 = nmf_forward(params, uidx2, iidx2, block_b=256,
                       compute_dtype=jnp.bfloat16)
    jax.block_until_ready(out3)
    assert jnp.allclose(out3, ref2, atol=2e-2, rtol=2e-2)

    print("KERNEL_OK")
</pallas_src>

<mosaic_0001>
module attributes {stable_mosaic.version = 11 : i64} {
  func.func @nmf_kernel(%arg0: i32, %arg1: memref<8x32xf32, #tpu.memory_space<vmem>>, %arg2: memref<8x32xf32, #tpu.memory_space<vmem>>, %arg3: memref<8x32xf32, #tpu.memory_space<vmem>>, %arg4: memref<8x32xf32, #tpu.memory_space<vmem>>, %arg5: memref<32x32xf32, #tpu.memory_space<vmem>>, %arg6: memref<32x32xf32, #tpu.memory_space<vmem>>, %arg7: memref<1x32xf32, #tpu.memory_space<vmem>>, %arg8: memref<1x32xf32, #tpu.memory_space<vmem>>, %arg9: memref<1x32xf32, #tpu.memory_space<vmem>>, %arg10: memref<1x1xf32, #tpu.memory_space<vmem>>, %arg11: memref<8x1xf32, #tpu.memory_space<vmem>>) attributes {dimension_semantics = [#tpu.dimension_semantics<parallel>], iteration_bounds = array<i64: 1>, scalar_prefetch = 0 : i64, scratch_operands = 0 : i64, tpu.core_type = #tpu.core_type<tc>, window_params = [{transform_indices = @transform_0, window_bounds = array<i64: 8, 32>}, {transform_indices = @transform_1, window_bounds = array<i64: 8, 32>}, {transform_indices = @transform_2, window_bounds = array<i64: 8, 32>}, {transform_indices = @transform_3, window_bounds = array<i64: 8, 32>}, {pipeline_mode = #tpu.pipeline_mode<synchronous>, transform_indices = @transform_4, window_bounds = array<i64: 32, 32>}, {pipeline_mode = #tpu.pipeline_mode<synchronous>, transform_indices = @transform_5, window_bounds = array<i64: 32, 32>}, {pipeline_mode = #tpu.pipeline_mode<synchronous>, transform_indices = @transform_6, window_bounds = array<i64: 1, 32>}, {pipeline_mode = #tpu.pipeline_mode<synchronous>, transform_indices = @transform_7, window_bounds = array<i64: 1, 32>}, {pipeline_mode = #tpu.pipeline_mode<synchronous>, transform_indices = @transform_8, window_bounds = array<i64: 1, 32>}, {pipeline_mode = #tpu.pipeline_mode<synchronous>, transform_indices = @transform_9, window_bounds = array<i64: 1, 1>}, {transform_indices = @transform_10, window_bounds = array<i64: 8, 1>}]} {
    %c0 = arith.constant 0 : index
    %c0_0 = arith.constant 0 : index
    %0 = vector.load %arg1[%c0, %c0_0] : memref<8x32xf32, #tpu.memory_space<vmem>>, vector<8x32xf32>
    %c0_1 = arith.constant 0 : index
    %c0_2 = arith.constant 0 : index
    %1 = vector.load %arg2[%c0_1, %c0_2] : memref<8x32xf32, #tpu.memory_space<vmem>>, vector<8x32xf32>
    %2 = arith.mulf %0, %1 : vector<8x32xf32>
    %c0_3 = arith.constant 0 : index
    %c0_4 = arith.constant 0 : index
    %3 = vector.load %arg3[%c0_3, %c0_4] : memref<8x32xf32, #tpu.memory_space<vmem>>, vector<8x32xf32>
    %c0_5 = arith.constant 0 : index
    %c0_6 = arith.constant 0 : index
    %4 = vector.load %arg5[%c0_5, %c0_6] : memref<32x32xf32, #tpu.memory_space<vmem>>, vector<32x32xf32>
    %cst = arith.constant dense<0.000000e+00> : vector<8x32xf32>
    %5 = tpu.matmul %3, %4, %cst {dimension_numbers = #tpu.dot_dimension_numbers<[1], [0], [0], [1], [0, 0, 1, 1], [], []>} : vector<8x32xf32>, vector<32x32xf32>, vector<8x32xf32> -> vector<8x32xf32>
    %c0_7 = arith.constant 0 : index
    %c0_8 = arith.constant 0 : index
    %6 = vector.load %arg4[%c0_7, %c0_8] : memref<8x32xf32, #tpu.memory_space<vmem>>, vector<8x32xf32>
    %c0_9 = arith.constant 0 : index
    %c0_10 = arith.constant 0 : index
    %7 = vector.load %arg6[%c0_9, %c0_10] : memref<32x32xf32, #tpu.memory_space<vmem>>, vector<32x32xf32>
    %cst_11 = arith.constant dense<0.000000e+00> : vector<8x32xf32>
    %8 = tpu.matmul %6, %7, %cst_11 {dimension_numbers = #tpu.dot_dimension_numbers<[1], [0], [0], [1], [0, 0, 1, 1], [], []>} : vector<8x32xf32>, vector<32x32xf32>, vector<8x32xf32> -> vector<8x32xf32>
    %9 = arith.addf %5, %8 : vector<8x32xf32>
    %c0_12 = arith.constant 0 : index
    %c0_13 = arith.constant 0 : index
    %10 = vector.load %arg7[%c0_12, %c0_13] : memref<1x32xf32, #tpu.memory_space<vmem>>, vector<1x32xf32>
    %11 = vector.broadcast %10 : vector<1x32xf32> to vector<8x32xf32>
    %12 = arith.addf %9, %11 : vector<8x32xf32>
    %cst_14 = arith.constant 0.000000e+00 : f32
    %13 = vector.broadcast %cst_14 : f32 to vector<8x32xf32>
    %14 = arith.maximumf %12, %13 : vector<8x32xf32>
    %c0_15 = arith.constant 0 : index
    %c0_16 = arith.constant 0 : index
    %15 = vector.load %arg8[%c0_15, %c0_16] : memref<1x32xf32, #tpu.memory_space<vmem>>, vector<1x32xf32>
    %16 = vector.broadcast %15 : vector<1x32xf32> to vector<8x32xf32>
    %17 = arith.mulf %2, %16 : vector<8x32xf32>
    %c0_17 = arith.constant 0 : index
    %c0_18 = arith.constant 0 : index
    %18 = vector.load %arg9[%c0_17, %c0_18] : memref<1x32xf32, #tpu.memory_space<vmem>>, vector<1x32xf32>
    %19 = vector.broadcast %18 : vector<1x32xf32> to vector<8x32xf32>
    %20 = arith.mulf %14, %19 : vector<8x32xf32>
    %21 = arith.addf %17, %20 : vector<8x32xf32>
    %cst_19 = arith.constant dense<0.000000e+00> : vector<8xf32>
    %22 = vector.multi_reduction <add>, %21, %cst_19 [1] : vector<8x32xf32> to vector<8xf32>
    %23 = vector.shape_cast %22 : vector<8xf32> to vector<8x1xf32>
    %c0_20 = arith.constant 0 : index
    %c0_21 = arith.constant 0 : index
    %24 = vector.load %arg10[%c0_20, %c0_21] : memref<1x1xf32, #tpu.memory_space<vmem>>, vector<1x1xf32>
    %25 = vector.broadcast %24 : vector<1x1xf32> to vector<8x1xf32>
    %26 = arith.addf %23, %25 : vector<8x1xf32>
    %c0_22 = arith.constant 0 : index
    %c0_23 = arith.constant 0 : index
    %27 = vector.load %arg11[%c0_22, %c0_23] : memref<8x1xf32, #tpu.memory_space<vmem>>, vector<8x1xf32>
    tpu.vector_store %arg11[%c0_22, %c0_23], %26 {strides = array<i32>} : memref<8x1xf32, #tpu.memory_space<vmem>>, vector<8x1xf32>,
    return
  }
  func.func @transform_0(%arg0: i32) -> (i32, i32) {
    %c0_i32 = arith.constant 0 : i32
    %c0_i32_0 = arith.constant 0 : i32
    return %arg0, %c0_i32 : i32, i32
  }
  func.func @transform_1(%arg0: i32) -> (i32, i32) {
    %c0_i32 = arith.constant 0 : i32
    %c0_i32_0 = arith.constant 0 : i32
    return %arg0, %c0_i32 : i32, i32
  }
  func.func @transform_2(%arg0: i32) -> (i32, i32) {
    %c0_i32 = arith.constant 0 : i32
    %c0_i32_0 = arith.constant 0 : i32
    return %arg0, %c0_i32 : i32, i32
  }
  func.func @transform_3(%arg0: i32) -> (i32, i32) {
    %c0_i32 = arith.constant 0 : i32
    %c0_i32_0 = arith.constant 0 : i32
    return %arg0, %c0_i32 : i32, i32
  }
  func.func @transform_4(%arg0: i32) -> (i32, i32) {
    %c0_i32 = arith.constant 0 : i32
    %c0_i32_0 = arith.constant 0 : i32
    %c0_i32_1 = arith.constant 0 : i32
    return %c0_i32, %c0_i32_0 : i32, i32
  }
  func.func @transform_5(%arg0: i32) -> (i32, i32) {
    %c0_i32 = arith.constant 0 : i32
    %c0_i32_0 = arith.constant 0 : i32
    %c0_i32_1 = arith.constant 0 : i32
    return %c0_i32, %c0_i32_0 : i32, i32
  }
  func.func @transform_6(%arg0: i32) -> (i32, i32) {
    %c0_i32 = arith.constant 0 : i32
    %c0_i32_0 = arith.constant 0 : i32
    %c0_i32_1 = arith.constant 0 : i32
    return %c0_i32, %c0_i32_0 : i32, i32
  }
  func.func @transform_7(%arg0: i32) -> (i32, i32) {
    %c0_i32 = arith.constant 0 : i32
    %c0_i32_0 = arith.constant 0 : i32
    %c0_i32_1 = arith.constant 0 : i32
    return %c0_i32, %c0_i32_0 : i32, i32
  }
  func.func @transform_8(%arg0: i32) -> (i32, i32) {
    %c0_i32 = arith.constant 0 : i32
    %c0_i32_0 = arith.constant 0 : i32
    %c0_i32_1 = arith.constant 0 : i32
    return %c0_i32, %c0_i32_0 : i32, i32
  }
  func.func @transform_9(%arg0: i32) -> (i32, i32) {
    %c0_i32 = arith.constant 0 : i32
    %c0_i32_0 = arith.constant 0 : i32
    %c0_i32_1 = arith.constant 0 : i32
    return %c0_i32, %c0_i32_0 : i32, i32
  }
  func.func @transform_10(%arg0: i32) -> (i32, i32) {
    %c0_i32 = arith.constant 0 : i32
    %c0_i32_0 = arith.constant 0 : i32
    return %arg0, %c0_i32 : i32, i32
  }
}

</mosaic_0001>

<llo_original>
// kernel: tpu_custom_call.1
$region0: #{tpu_custom_call.1}
  #allocation0 [shape = 'u32[]', space=smem, size = 0x4, offset = 0x4, fixed_abs, tag = 'smem constant byte address 0x4 - core index']
  #allocation1 [shape = 'u32[144,128]{1,0:T(1,128)}', space=vmem, size = 0x12000, scoped, tag = 'internal scratch']
  #allocation2 [shape = 'f32[1,1]{1,0:T(1,128)S(1)}', space=vmem, size = 0x200, scoped, tag = 'scoped memory for tpu_custom_call.1']
  %s0 = inlined_call_operand.hbm [shape: f32[8,32], index: 0, kind: input, shape index: {}]
  %s1 = inlined_call_operand.hbm [shape: f32[8,32], index: 1, kind: input, shape index: {}]
  %s2 = inlined_call_operand.hbm [shape: f32[8,32], index: 2, kind: input, shape index: {}]
  %s3 = inlined_call_operand.hbm [shape: f32[8,32], index: 3, kind: input, shape index: {}]
  %s4 = inlined_call_operand.hbm [shape: f32[32,32], index: 4, kind: input, shape index: {}]
  %s5 = inlined_call_operand.hbm [shape: f32[32,32], index: 5, kind: input, shape index: {}]
  %s6 = inlined_call_operand.vmem [shape: f32[1,32], index: 6, kind: input, shape index: {}]
  %s7 = inlined_call_operand.vmem [shape: f32[1,32], index: 7, kind: input, shape index: {}]
  %s8 = inlined_call_operand.vmem [shape: f32[1,32], index: 8, kind: input, shape index: {}]
  %s9 = inlined_call_operand.<no memory space> [shape: f32[1,1], index: 9, kind: input, shape index: {}]
  %s10 = inlined_call_operand.vmem [shape: f32[8,1], index: 10, kind: output, shape index: {}]
  %s11 = sld [smem:[#allocation0]]
  $region74: #{tpu_custom_call.1} parent=0
    _
  %s13 = ssub.s32 1, %s11
  %s14 = scalar_select 0, %s13, %s11
  %v15 = vstv %s9
  %16 = vst [vmem:[#allocation2] sm:$0x1] %v15
  $region1: #{tpu_custom_call.1} parent=0
    #allocation3 [shape = 'u8[4096]{0}', space=vmem, size = 0x1000, scoped, tag = 'input window, operand 0, single buffered']
    #allocation4 [shape = 's32[1]{0}', space=sflag, size = 0x4, scoped, tag = 'scoped memory for tpu_custom_call.1']
    #allocation5 [shape = 'u8[4096]{0}', space=vmem, size = 0x1000, scoped, tag = 'input window, operand 1, single buffered']
    #allocation6 [shape = 's32[1]{0}', space=sflag, size = 0x4, scoped, tag = 'scoped memory for tpu_custom_call.1']
    #allocation7 [shape = 'u8[4096]{0}', space=vmem, size = 0x1000, scoped, tag = 'input window, operand 2, single buffered']
    #allocation8 [shape = 'u8[4096]{0}', space=vmem, size = 0x1000, scoped, tag = 'input window, operand 3, single buffered']
    #allocation9 [shape = 's32[1]{0}', space=sflag, size = 0x4, scoped, tag = 'scoped memory for tpu_custom_call.1']
    #allocation10 [shape = 'u8[16384]{0}', space=vmem, size = 0x4000, scoped, tag = 'input window, operand 4, single buffered']
    #allocation11 [shape = 'u8[16384]{0}', space=vmem, size = 0x4000, scoped, tag = 'input window, operand 5, single buffered']
    #allocation12 [shape = 's32[1]{0}', space=sflag, size = 0x4, scoped, tag = 'scoped memory for tpu_custom_call.1']
    %17 = vsyncpa [#allocation4], 0
    %18 = vsyncpa [#allocation6], 0
    %19 = vsyncpa [#allocation9], 0
    %20 = vsyncpa [#allocation12], 0
    // Predicated region
    $region2: #{tpu_custom_call.1} parent=1 // pred_check
      _
    $region3: #{tpu_custom_call.1} parent=1 // pred_check_branch
      %22 = sbr.rel (0) target = $region5
    $region4: #{tpu_custom_call.1} parent=1 // pred_region
      %s24 = ssub.s32 128, 128
      %25 = vsyncadd [#allocation4], %s24
      %s27 = sshll.u32 [#allocation3], 4
      %s28 = int_to_ptr.vmem [resolvable:$true] %s27
      %30 = dma.hbm_to_vmem [thread:$0]  %s0, 128, %s28, [#allocation4]
    $region5: #{tpu_custom_call.1} parent=1 // pred_fallthru
      _
    // Predicated region
    $region6: #{tpu_custom_call.1} parent=1 // pred_check
      _
    $region7: #{tpu_custom_call.1} parent=1 // pred_check_branch
      %32 = sbr.rel (0) target = $region9
    $region8: #{tpu_custom_call.1} parent=1 // pred_region
      %s34 = ssub.s32 128, 128
      %35 = vsyncadd [#allocation6], %s34
      %s37 = sshll.u32 [#allocation5], 4
      %s38 = int_to_ptr.vmem [resolvable:$true] %s37
      %40 = dma.hbm_to_vmem [thread:$0]  %s1, 128, %s38, [#allocation6]
    $region9: #{tpu_custom_call.1} parent=1 // pred_fallthru
      _
    // Predicated region
    $region10: #{tpu_custom_call.1} parent=1 // pred_check
      _
    $region11: #{tpu_custom_call.1} parent=1 // pred_check_branch
      %42 = sbr.rel (0) target = $region13
    $region12: #{tpu_custom_call.1} parent=1 // pred_region
      %s44 = ssub.s32 128, 128
      %45 = vsyncadd [#allocation6], %s44
      %s47 = sshll.u32 [#allocation7], 4
      %s48 = int_to_ptr.vmem [resolvable:$true] %s47
      %50 = dma.hbm_to_vmem [thread:$0]  %s2, 128, %s48, [#allocation6]
    $region13: #{tpu_custom_call.1} parent=1 // pred_fallthru
      _
    // Predicated region
    $region14: #{tpu_custom_call.1} parent=1 // pred_check
      _
    $region15: #{tpu_custom_call.1} parent=1 // pred_check_branch
      %52 = sbr.rel (0) target = $region17
    $region16: #{tpu_custom_call.1} parent=1 // pred_region
      %s54 = ssub.s32 128, 128
      %55 = vsyncadd [#allocation9], %s54
      %s57 = sshll.u32 [#allocation8], 4
      %s58 = int_to_ptr.vmem [resolvable:$true] %s57
      %60 = dma.hbm_to_vmem [thread:$0]  %s3, 128, %s58, [#allocation9]
    $region17: #{tpu_custom_call.1} parent=1 // pred_fallthru
      _
    // Predicated region
    $region18: #{tpu_custom_call.1} parent=1 // pred_check
      _
    $region19: #{tpu_custom_call.1} parent=1 // pred_check_branch
      %62 = sbr.rel (0) target = $region21
    $region20: #{tpu_custom_call.1} parent=1 // pred_region
      %s64 = ssub.s32 512, 512
      %65 = vsyncadd [#allocation9], %s64
      %s66 = sshll.u32 [#allocation10], 4
      %s67 = int_to_ptr.vmem [resolvable:$true] %s66
      %72 = dma.hbm_to_vmem [thread:$0]  %s4, 512, %s67, [#allocation9], 128, 128, 8
    $region21: #{tpu_custom_call.1} parent=1 // pred_fallthru
      _
    // Predicated region
    $region22: #{tpu_custom_call.1} parent=1 // pred_check
      _
    $region23: #{tpu_custom_call.1} parent=1 // pred_check_branch
      %74 = sbr.rel (0) target = $region25
    $region24: #{tpu_custom_call.1} parent=1 // pred_region
      %s76 = ssub.s32 512, 512
      %77 = vsyncadd [#allocation12], %s76
      %s78 = sshll.u32 [#allocation11], 4
      %s79 = int_to_ptr.vmem [resolvable:$true] %s78
      %84 = dma.hbm_to_vmem [thread:$0]  %s5, 512, %s79, [#allocation12], 128, 128, 8
    $region25: #{tpu_custom_call.1} parent=1 // pred_fallthru
      _
    // Predicated region
    $region26: #{tpu_custom_call.1} parent=1 // pred_check
      _
    $region27: #{tpu_custom_call.1} parent=1 // pred_check_branch
      %86 = sbr.rel (0) target = $region29
    $region28: #{tpu_custom_call.1} parent=1 // pred_region
      _
    $region29: #{tpu_custom_call.1} parent=1 // pred_fallthru
      _
    // Predicated region
    $region30: #{tpu_custom_call.1} parent=1 // pred_check
      _
    $region31: #{tpu_custom_call.1} parent=1 // pred_check_branch
      %88 = sbr.rel (0) target = $region33
    $region32: #{tpu_custom_call.1} parent=1 // pred_region
      _
    $region33: #{tpu_custom_call.1} parent=1 // pred_fallthru
      _
    // Predicated region
    $region34: #{tpu_custom_call.1} parent=1 // pred_check
      _
    $region35: #{tpu_custom_call.1} parent=1 // pred_check_branch
      %90 = sbr.rel (0) target = $region37
    $region36: #{tpu_custom_call.1} parent=1 // pred_region
      _
    $region37: #{tpu_custom_call.1} parent=1 // pred_fallthru
      _
    // Predicated region
    $region38: #{tpu_custom_call.1} parent=1 // pred_check
      _
    $region39: #{tpu_custom_call.1} parent=1 // pred_check_branch
      %92 = sbr.rel (0) target = $region41
    $region40: #{tpu_custom_call.1} parent=1 // pred_region
      _
    $region41: #{tpu_custom_call.1} parent=1 // pred_fallthru
      _
    // Predicated region
    $region42: #{tpu_custom_call.1} parent=1 // pred_check
      _
    $region43: #{tpu_custom_call.1} parent=1 // pred_check_branch
      %94 = sbr.rel (0) target = $region45
    $region44: #{tpu_custom_call.1} parent=1 // pred_region
      %95 = dma.done [#allocation4], 128
    $region45: #{tpu_custom_call.1} parent=1 // pred_fallthru
      _
    // Predicated region
    $region46: #{tpu_custom_call.1} parent=1 // pred_check
      _
    $region47: #{tpu_custom_call.1} parent=1 // pred_check_branch
      %97 = sbr.rel (0) target = $region49
    $region48: #{tpu_custom_call.1} parent=1 // pred_region
      %98 = dma.done [#allocation6], 128
    $region49: #{tpu_custom_call.1} parent=1 // pred_fallthru
      _
    // Predicated region
    $region50: #{tpu_custom_call.1} parent=1 // pred_check
      _
    $region51: #{tpu_custom_call.1} parent=1 // pred_check_branch
      %100 = sbr.rel (0) target = $region53
    $region52: #{tpu_custom_call.1} parent=1 // pred_region
      %101 = dma.done [#allocation6], 128
    $region53: #{tpu_custom_call.1} parent=1 // pred_fallthru
      _
    // Predicated region
    $region54: #{tpu_custom_call.1} parent=1 // pred_check
      _
    $region55: #{tpu_custom_call.1} parent=1 // pred_check_branch
      %103 = sbr.rel (0) target = $region57
    $region56: #{tpu_custom_call.1} parent=1 // pred_region
      %104 = dma.done [#allocation9], 128
    $region57: #{tpu_custom_call.1} parent=1 // pred_fallthru
      _
    // Predicated region
    $region58: #{tpu_custom_call.1} parent=1 // pred_check
      _
    $region59: #{tpu_custom_call.1} parent=1 // pred_check_branch
      %106 = sbr.rel (0) target = $region61
    $region60: #{tpu_custom_call.1} parent=1 // pred_region
      %107 = dma.done [#allocation9], 512
    $region61: #{tpu_custom_call.1} parent=1 // pred_fallthru
      _
    // Predicated region
    $region62: #{tpu_custom_call.1} parent=1 // pred_check
      _
    $region63: #{tpu_custom_call.1} parent=1 // pred_check_branch
      %109 = sbr.rel (0) target = $region65
    $region64: #{tpu_custom_call.1} parent=1 // pred_region
      %110 = dma.done [#allocation12], 512
    $region65: #{tpu_custom_call.1} parent=1 // pred_fallthru
      _
    %v111 = vld [vmem:[#allocation3] sm:$0xff]
    %v112 = vld [vmem:[#allocation5] sm:$0xff]
    %v113 = vmul.f32 %v111, %v112
    %v114 = vld [vmem:[#allocation7] sm:$0xff]
    %v115 = vld [vmem:[#allocation10] sm:$0xff]
    %v116 = vld [vmem:[#allocation10 + $0x8] sm:$0xff]
    %v117 = vld [vmem:[#allocation10 + $0x10] sm:$0xff]
    %v118 = vld [vmem:[#allocation10 + $0x18] sm:$0xff]
    %v119 = vld [vmem:[#allocation8] sm:$0xff]
    %v120 = vld [vmem:[#allocation11] sm:$0xff]
    %v121 = vld [vmem:[#allocation11 + $0x8] sm:$0xff]
    %v122 = vld [vmem:[#allocation11 + $0x10] sm:$0xff]
    %v123 = vld [vmem:[#allocation11 + $0x18] sm:$0xff]
    %vm124 = vcmask 261120
    %v126 = vsel %vm124, %v119, 0
    %128 = vmatprep.subr.mxu0 0.0
    %129 = vmatpush1.msra.mxu0 0.0
    %130 = vmatprep.subr.mxu0 0.0
    %131 = vmatpush1.msra.mxu0 0.0
    %132 = vmatprep.subr.mxu0 0.0
    %133 = vmatpush1.msra.mxu0 0.0
    %134 = vmatprep.subr.mxu0 0.0
    %135 = vmatpush1.msra.mxu0 0.0
    %136 = vmatprep.subr.mxu0 0.0
    %137 = vmatpush1.msra.mxu0 0.0
    %138 = vmatprep.subr.mxu0 0.0
    %139 = vmatpush1.msra.mxu0 0.0
    %140 = vmatprep.subr.mxu0 0.0
    %141 = vmatpush1.msra.mxu0 0.0
    %142 = vmatprep.subr.mxu0 0.0
    %143 = vmatpush1.msra.mxu0 0.0
    %144 = vmatprep.subr.mxu0 0.0
    %145 = vmatpush1.msra.mxu0 0.0
    %146 = vmatprep.subr.mxu0 0.0
    %147 = vmatpush1.msra.mxu0 0.0
    %148 = vmatprep.subr.mxu0 0.0
    %149 = vmatpush1.msra.mxu0 0.0
    %150 = vmatprep.subr.mxu0 0.0
    %151 = vmatpush1.msra.mxu0 0.0
    %152 = vmatprep.subr.mxu0 0.0
    %153 = vmatpush1.msra.mxu0 %v123
    %154 = vmatprep.subr.mxu0 0.0
    %155 = vmatpush1.msra.mxu0 %v122
    %156 = vmatprep.subr.mxu0 0.0
    %157 = vmatpush1.msra.mxu0 %v121
    %158 = vmatprep.subr.mxu0 0.0
    %159 = vmatpush1.msra.mxu0 %v120
    %160 = vmatprep.subr.mxu0 0.0
    %161 = vmatpush2.msra.mxu0 0.0
    %162 = vmatprep.subr.mxu0 0.0
    %163 = vmatpush2.msra.mxu0 0.0
    %164 = vmatprep.subr.mxu0 0.0
    %165 = vmatpush2.msra.mxu0 0.0
    %166 = vmatprep.subr.mxu0 0.0
    %167 = vmatpush2.msra.mxu0 0.0
    %168 = vmatprep.subr.mxu0 0.0
    %169 = vmatpush2.msra.mxu0 0.0
    %170 = vmatprep.subr.mxu0 0.0
    %171 = vmatpush2.msra.mxu0 0.0
    %172 = vmatprep.subr.mxu0 0.0
    %173 = vmatpush2.msra.mxu0 0.0
    %174 = vmatprep.subr.mxu0 0.0
    %175 = vmatpush2.msra.mxu0 0.0
    %176 = vmatprep.subr.mxu0 0.0
    %177 = vmatpush2.msra.mxu0 0.0
    %178 = vmatprep.subr.mxu0 0.0
    %179 = vmatpush2.msra.mxu0 0.0
    %180 = vmatprep.subr.mxu0 0.0
    %181 = vmatpush2.msra.mxu0 0.0
    %182 = vmatprep.subr.mxu0 0.0
    %183 = vmatpush2.msra.mxu0 0.0
    %184 = vmatprep.subr.mxu0 0.0
    %185 = vmatpush2.msra.mxu0 0.0
    %186 = vmatprep.subr.mxu0 0.0
    %187 = vmatpush2.msra.mxu0 0.0
    %188 = vmatprep.subr.mxu0 0.0
    %189 = vmatpush2.msra.mxu0 0.0
    %190 = vmatprep.subr.mxu0 0.0
    %191 = vmatpush2.msra.mxu0 0.0
    %192 = vmatprep.mubr.f32.mxu0 0.0
    %193 = vmatmul.mubr.f32.gmra.mxu0 %v126
    %v194 = vpop.f32.mrf.mxu0
    %v195 = vadd.f32 0.0, %v194
    %v196 = vpop.f32.mrf.mxu0
    %197 = vdwg.mxu0
    %v199 = vsel %vm124, %v114, 0
    %201 = vmatprep.subr.mxu0 0.0
    %202 = vmatpush1.msra.mxu0 0.0
    %203 = vmatprep.subr.mxu0 0.0
    %204 = vmatpush1.msra.mxu0 0.0
    %205 = vmatprep.subr.mxu0 0.0
    %206 = vmatpush1.msra.mxu0 0.0
    %207 = vmatprep.subr.mxu0 0.0
    %208 = vmatpush1.msra.mxu0 0.0
    %209 = vmatprep.subr.mxu0 0.0
    %210 = vmatpush1.msra.mxu0 0.0
    %211 = vmatprep.subr.mxu0 0.0
    %212 = vmatpush1.msra.mxu0 0.0
    %213 = vmatprep.subr.mxu0 0.0
    %214 = vmatpush1.msra.mxu0 0.0
    %215 = vmatprep.subr.mxu0 0.0
    %216 = vmatpush1.msra.mxu0 0.0
    %217 = vmatprep.subr.mxu0 0.0
    %218 = vmatpush1.msra.mxu0 0.0
    %219 = vmatprep.subr.mxu0 0.0
    %220 = vmatpush1.msra.mxu0 0.0
    %221 = vmatprep.subr.mxu0 0.0
    %222 = vmatpush1.msra.mxu0 0.0
    %223 = vmatprep.subr.mxu0 0.0
    %224 = vmatpush1.msra.mxu0 0.0
    %225 = vmatprep.subr.mxu0 0.0
    %226 = vmatpush1.msra.mxu0 %v118
    %227 = vmatprep.subr.mxu0 0.0
    %228 = vmatpush1.msra.mxu0 %v117
    %229 = vmatprep.subr.mxu0 0.0
    %230 = vmatpush1.msra.mxu0 %v116
    %231 = vmatprep.subr.mxu0 0.0
    %232 = vmatpush1.msra.mxu0 %v115
    %233 = vmatprep.subr.mxu0 0.0
    %234 = vmatpush2.msra.mxu0 0.0
    %235 = vmatprep.subr.mxu0 0.0
    %236 = vmatpush2.msra.mxu0 0.0
    %237 = vmatprep.subr.mxu0 0.0
    %238 = vmatpush2.msra.mxu0 0.0
    %239 = vmatprep.subr.mxu0 0.0
    %240 = vmatpush2.msra.mxu0 0.0
    %241 = vmatprep.subr.mxu0 0.0
    %242 = vmatpush2.msra.mxu0 0.0
    %243 = vmatprep.subr.mxu0 0.0
    %244 = vmatpush2.msra.mxu0 0.0
    %245 = vmatprep.subr.mxu0 0.0
    %246 = vmatpush2.msra.mxu0 0.0
    %247 = vmatprep.subr.mxu0 0.0
    %248 = vmatpush2.msra.mxu0 0.0
    %249 = vmatprep.subr.mxu0 0.0
    %250 = vmatpush2.msra.mxu0 0.0
    %251 = vmatprep.subr.mxu0 0.0
    %252 = vmatpush2.msra.mxu0 0.0
    %253 = vmatprep.subr.mxu0 0.0
    %254 = vmatpush2.msra.mxu0 0.0
    %255 = vmatprep.subr.mxu0 0.0
    %256 = vmatpush2.msra.mxu0 0.0
    %257 = vmatprep.subr.mxu0 0.0
    %258 = vmatpush2.msra.mxu0 0.0
    %259 = vmatprep.subr.mxu0 0.0
    %260 = vmatpush2.msra.mxu0 0.0
    %261 = vmatprep.subr.mxu0 0.0
    %262 = vmatpush2.msra.mxu0 0.0
    %263 = vmatprep.subr.mxu0 0.0
    %264 = vmatpush2.msra.mxu0 0.0
    %265 = vmatprep.mubr.f32.mxu0 0.0
    %266 = vmatmul.mubr.f32.gmra.mxu0 %v199
    %v267 = vpop.f32.mrf.mxu0
    %v268 = vadd.f32 %v195, %v267
    %v269 = vpop.f32.mrf.mxu0
    %270 = vdwg.mxu0
    %v271 = vld [vmem:[%s6] sm:$0x1]
    %v273 = vlaneseq
    %v274 = vshrl.u32 %v273, 7
    %v275 = vsub.s32 0, %v274
    %v276 = vrot.slane %v271, %v275
    %v278 = vadd.f32 %v268, %v276
    %v279 = vmax.f32 %v278, 0.0
    %v280 = vld [vmem:[%s7] sm:$0x1]
    %v282 = vlaneseq
    %v283 = vshrl.u32 %v282, 7
    %v284 = vsub.s32 0, %v283
    %v285 = vrot.slane %v280, %v284
    %v287 = vmul.f32 %v113, %v285
    %v288 = vld [vmem:[%s8] sm:$0x1]
    %v290 = vlaneseq
    %v291 = vshrl.u32 %v290, 7
    %v292 = vsub.s32 0, %v291
    %v293 = vrot.slane %v288, %v292
    %v295 = vmul.f32 %v279, %v293
    %v296 = vadd.f32 %v287, %v295
    %v297 = vsel %vm124, %v296, 0.0
    %298 = vadd.xlane.f32.xlu0 %v297
    %v299 = vpop.xlane.xlu0 %298
    %v300 = vld [vmem:[#allocation2] sm:$0x1]
    %v302 = vlaneseq
    %v303 = vshrl.u32 %v302, 7
    %v304 = vsub.s32 0, %v303
    %v305 = vrot.slane %v300, %v304
    %v307 = vadd.f32 %v299, %v305
    %vm308 = vcmask 7168
    %309 = vst.msk [vmem:[%s10] sm:$0xff] %vm308, %v307
    // Predicated region
    $region66: #{tpu_custom_call.1} parent=1 // pred_check
      _
    $region67: #{tpu_custom_call.1} parent=1 // pred_check_branch
      %311 = sbr.rel (0) target = $region69
    $region68: #{tpu_custom_call.1} parent=1 // pred_region
      _
    $region69: #{tpu_custom_call.1} parent=1 // pred_fallthru
      _
    // Predicated region
    $region70: #{tpu_custom_call.1} parent=1 // pred_check
      _
    $region71: #{tpu_custom_call.1} parent=1 // pred_check_branch
      %313 = sbr.rel (0) target = $region73
    $region72: #{tpu_custom_call.1} parent=1 // pred_region
      _
    $region73: #{tpu_custom_call.1} parent=1 // pred_fallthru
      _
    %314 = vsyncpa [#allocation4], 1
    %315 = vsyncpa [#allocation6], 1
    %316 = vsyncpa [#allocation9], 1
    %317 = vsyncpa [#allocation12], 1

</llo_original>
